<compile_context>
chip_gen: v7x
topology: tpu7x:2x2x1
jax: 0.10.0
libtpu: 0.0.40
codegen_flags: <defaults>
</compile_context>

<pallas_src>
import functools

import jax
import jax.numpy as jnp
from jax.experimental import pallas as pl
from jax.experimental.pallas import tpu as pltpu

SIZE_H1 = 50
SIZE_H2 = 20
LANE = 128               # TPU lane width; all feature dims are padded to this.
MAX_BLOCK_BATCH = 2048   # batch tile for large (training/replay) batches
MIN_TWO_STEP_BATCH = 256 # medium batches get >= 2 grid steps (v7x has 2 TCs)
MXU_L1_THRESHOLD = 8     # dim_input above this -> layer 1 moves to the MXU


def _round_up(n, m):
    return -(-n // m) * m


def make_actor_kernel(dim_input, out_cols):
    """Build the kernel body (dim_input / out_cols are static Python ints)."""
    use_mxu_l1 = dim_input > MXU_L1_THRESHOLD

    def kernel(x_ref, w_ref, b_ref, o_ref):
        x = x_ref[...]          # (TB, dim_input) or (TB, 128) if use_mxu_l1
        W = w_ref[...]          # (3, 128, 128) f32, zero-padded
        Bv = b_ref[...]         # (3, 128)      f32, zero-padded
        tb = x.shape[0]

        # ---- Layer 1: tiny K (e.g. 2) -> broadcast FMA on the VPU; larger K -> MXU.
        if use_mxu_l1:
            h1 = jnp.dot(x, W[0], preferred_element_type=jnp.float32) + Bv[0:1, :]
        else:
            h1 = jnp.broadcast_to(Bv[0:1, :], (tb, LANE))       # (TB, 128)
            for k in range(dim_input):                           # unrolled (static)
                h1 = h1 + x[:, k:k + 1] * W[0, k:k + 1, :]
        h1 = jnp.maximum(h1, 0.0)                                # cols >= 50 are 0

        # ---- Layer 2 (MXU): 50x20 padded to 128x128, f32 accumulation.
        h2 = jnp.dot(h1, W[1], preferred_element_type=jnp.float32) + Bv[1:2, :]
        h2 = jnp.maximum(h2, 0.0)                                # cols >= 20 are 0

        # ---- Layer 3 (MXU): 20 x dim_output padded to 128x128.  Padded W[2]/Bv[2]
        #      columns are zero, so lanes >= dim_output of `out` are exact zeros.
        out = jnp.dot(h2, W[2], preferred_element_type=jnp.float32) + Bv[2:3, :]

        # Narrow HBM write: only the first out_cols lanes are stored.
        o_ref[...] = out[:, :out_cols]

    return kernel


@functools.partial(jax.jit, static_argnames=("dim_input", "dim_output"))
def _actor_forward_impl(x, w_slab, b_slab, dim_input, dim_output):
    B = x.shape[0]
    out_cols = min(LANE, _round_up(dim_output, 8))

    # Pick the batch tile.
    if B <= MAX_BLOCK_BATCH:
        if B >= MIN_TWO_STEP_BATCH:
            # >= 2 grid steps so the "parallel" axis shards across v7x's 2 TCs.
            TB = max(8, _round_up(-(-B // 2), 8))
        else:
            TB = max(8, _round_up(B, 8))
    else:
        TB = MAX_BLOCK_BATCH
    B_pad = _round_up(B, TB)

    use_mxu_l1 = dim_input > MXU_L1_THRESHOLD
    x_cols = LANE if use_mxu_l1 else dim_input
    pad_rows = B_pad - B
    pad_cols = x_cols - dim_input
    if pad_rows or pad_cols:
        x = jnp.pad(x, ((0, pad_rows), (0, pad_cols)))

    out_padded = pl.pallas_call(
        make_actor_kernel(dim_input, out_cols),
        out_shape=jax.ShapeDtypeStruct((B_pad, out_cols), jnp.float32),
        grid=(B_pad // TB,),
        in_specs=[
            # activations: tiled along the batch
            pl.BlockSpec((TB, x_cols), lambda i: (i, 0)),
            # packed weight slab: constant block index -> fetched once, VMEM-resident
            pl.BlockSpec((3, LANE, LANE), lambda i: (0, 0, 0)),
            # packed bias slab: constant block index -> fetched once, VMEM-resident
            pl.BlockSpec((3, LANE), lambda i: (0, 0)),
        ],
        out_specs=pl.BlockSpec((TB, out_cols), lambda i: (i, 0)),
        compiler_params=pltpu.CompilerParams(
            dimension_semantics=("parallel",),   # batch axis shards across TCs (v7x)
        ),
    )(x, w_slab, b_slab)

    return out_padded[:B, :dim_output]


def actor_forward(x, params):
    """x: (B, dim_input) f32.  params: dict from init_actor_params / pack_actor_params."""
    return _actor_forward_impl(
        x, params["w_slab"], params["b_slab"],
        params["dim_input"], params["dim_output"],
    )


def pack_actor_params(w1, b1, w2, b2, w3, b3):
    """Pack per-layer (in_features, out_features) weights and (out_features,) biases
    into one zero-padded (3, 128, 128) weight slab and one (3, 128) bias slab."""
    din, dout = w1.shape[0], w3.shape[1]
    assert din <= LANE and dout <= LANE and SIZE_H1 <= LANE and SIZE_H2 <= LANE

    def pad_w(w):
        return jnp.pad(w, ((0, LANE - w.shape[0]), (0, LANE - w.shape[1])))

    def pad_b(b):
        return jnp.pad(b, (0, LANE - b.shape[0]))

    w_slab = jnp.stack([pad_w(w1), pad_w(w2), pad_w(w3)]).astype(jnp.float32)
    b_slab = jnp.stack([pad_b(b1), pad_b(b2), pad_b(b3)]).astype(jnp.float32)
    return {"w_slab": w_slab, "b_slab": b_slab,
            "dim_input": din, "dim_output": dout}


def init_actor_params(key, dim_input, dim_output):
    """Deterministic init mimicking torch.nn.Linear default:
    U(-1/sqrt(fan_in), 1/sqrt(fan_in)) for weight and bias.
    Weights are stored (in_features, out_features) so the kernel does x @ W + b."""
    def linear(k, fan_in, fan_out):
        kw, kb = jax.random.split(k)
        bound = 1.0 / jnp.sqrt(jnp.float32(fan_in))
        w = jax.random.uniform(kw, (fan_in, fan_out), jnp.float32, -bound, bound)
        b = jax.random.uniform(kb, (fan_out,), jnp.float32, -bound, bound)
        return w, b

    k1, k2, k3 = jax.random.split(key, 3)
    w1, b1 = linear(k1, dim_input, SIZE_H1)
    w2, b2 = linear(k2, SIZE_H1, SIZE_H2)
    w3, b3 = linear(k3, SIZE_H2, dim_output)
    return pack_actor_params(w1, b1, w2, b2, w3, b3)


def actor_reference(x, params):
    """Pure-JAX reference (unpacks the padded slabs)."""
    W, Bv = params["w_slab"], params["b_slab"]
    din, dout = params["dim_input"], params["dim_output"]
    w1, b1 = W[0, :din, :SIZE_H1], Bv[0, :SIZE_H1]
    w2, b2 = W[1, :SIZE_H1, :SIZE_H2], Bv[1, :SIZE_H2]
    w3, b3 = W[2, :SIZE_H2, :dout], Bv[2, :dout]
    h1 = jnp.maximum(x @ w1 + b1, 0.0)
    h2 = jnp.maximum(h1 @ w2 + b2, 0.0)
    return h2 @ w3 + b3


if __name__ == "__main__":
    # MountainCarContinuous: observation dim = 2, action dim = 1
    DIM_INPUT, DIM_OUTPUT, BATCH = 2, 1, 8

    key = jax.random.PRNGKey(0)
    k_params, k_x = jax.random.split(key)
    params = init_actor_params(k_params, DIM_INPUT, DIM_OUTPUT)
    x = jax.random.normal(k_x, (BATCH, DIM_INPUT), jnp.float32)

    out = jax.block_until_ready(actor_forward(x, params))
    ref = actor_reference(x, params)

    assert out.shape == (BATCH, DIM_OUTPUT)
    assert jnp.allclose(out, ref, atol=1e-5, rtol=1e-5)

    print("KERNEL_OK")
</pallas_src>

<mosaic_0001>
module attributes {stable_mosaic.version = 11 : i64} {
  func.func @kernel(%arg0: i32, %arg1: memref<8x2xf32, #tpu.memory_space<vmem>>, %arg2: memref<3x128x128xf32, #tpu.memory_space<vmem>>, %arg3: memref<3x128xf32, #tpu.memory_space<vmem>>, %arg4: memref<8x8xf32, #tpu.memory_space<vmem>>) attributes {dimension_semantics = [#tpu.dimension_semantics<parallel>], iteration_bounds = array<i64: 1>, scalar_prefetch = 0 : i64, scratch_operands = 0 : i64, tpu.core_type = #tpu.core_type<tc>, window_params = [{transform_indices = @transform_0, window_bounds = array<i64: 8, 2>}, {pipeline_mode = #tpu.pipeline_mode<synchronous>, transform_indices = @transform_1, window_bounds = array<i64: 3, 128, 128>}, {pipeline_mode = #tpu.pipeline_mode<synchronous>, transform_indices = @transform_2, window_bounds = array<i64: 3, 128>}, {transform_indices = @transform_3, window_bounds = array<i64: 8, 8>}]} {
    %c0 = arith.constant 0 : index
    %c0_0 = arith.constant 0 : index
    %0 = vector.load %arg1[%c0, %c0_0] : memref<8x2xf32, #tpu.memory_space<vmem>>, vector<8x2xf32>
    %c0_1 = arith.constant 0 : index
    %c0_2 = arith.constant 0 : index
    %c0_3 = arith.constant 0 : index
    %1 = vector.load %arg2[%c0_1, %c0_2, %c0_3] : memref<3x128x128xf32, #tpu.memory_space<vmem>>, vector<3x128x128xf32>
    %c0_4 = arith.constant 0 : index
    %c0_5 = arith.constant 0 : index
    %2 = vector.load %arg3[%c0_4, %c0_5] : memref<3x128xf32, #tpu.memory_space<vmem>>, vector<3x128xf32>
    %3 = vector.extract_strided_slice %2 {offsets = [0, 0], sizes = [1, 128], strides = [1, 1]} : vector<3x128xf32> to vector<1x128xf32>
    %4 = vector.shape_cast %3 : vector<1x128xf32> to vector<1x128xf32>
    %5 = vector.broadcast %4 : vector<1x128xf32> to vector<8x128xf32>
    %6 = vector.extract_strided_slice %0 {offsets = [0, 0], sizes = [8, 1], strides = [1, 1]} : vector<8x2xf32> to vector<8x1xf32>
    %7 = vector.extract_strided_slice %1 {offsets = [0, 0, 0], sizes = [1, 1, 128], strides = [1, 1, 1]} : vector<3x128x128xf32> to vector<1x1x128xf32>
    %8 = vector.shape_cast %7 : vector<1x1x128xf32> to vector<1x128xf32>
    %9 = vector.broadcast %6 : vector<8x1xf32> to vector<8x128xf32>
    %10 = vector.broadcast %8 : vector<1x128xf32> to vector<8x128xf32>
    %11 = arith.mulf %9, %10 : vector<8x128xf32>
    %12 = arith.addf %5, %11 : vector<8x128xf32>
    %13 = vector.extract_strided_slice %0 {offsets = [0, 1], sizes = [8, 1], strides = [1, 1]} : vector<8x2xf32> to vector<8x1xf32>
    %14 = vector.extract_strided_slice %1 {offsets = [0, 1, 0], sizes = [1, 1, 128], strides = [1, 1, 1]} : vector<3x128x128xf32> to vector<1x1x128xf32>
    %15 = vector.shape_cast %14 : vector<1x1x128xf32> to vector<1x128xf32>
    %16 = vector.broadcast %13 : vector<8x1xf32> to vector<8x128xf32>
    %17 = vector.broadcast %15 : vector<1x128xf32> to vector<8x128xf32>
    %18 = arith.mulf %16, %17 : vector<8x128xf32>
    %19 = arith.addf %12, %18 : vector<8x128xf32>
    %cst = arith.constant 0.000000e+00 : f32
    %20 = vector.broadcast %cst : f32 to vector<8x128xf32>
    %21 = arith.maximumf %19, %20 : vector<8x128xf32>
    %22 = vector.extract_strided_slice %1 {offsets = [1, 0, 0], sizes = [1, 128, 128], strides = [1, 1, 1]} : vector<3x128x128xf32> to vector<1x128x128xf32>
    %23 = vector.shape_cast %22 : vector<1x128x128xf32> to vector<128x128xf32>
    %cst_6 = arith.constant dense<0.000000e+00> : vector<8x128xf32>
    %24 = tpu.matmul %21, %23, %cst_6 {dimension_numbers = #tpu.dot_dimension_numbers<[1], [0], [0], [1], [0, 0, 1, 1], [], []>} : vector<8x128xf32>, vector<128x128xf32>, vector<8x128xf32> -> vector<8x128xf32>
    %25 = vector.extract_strided_slice %2 {offsets = [1, 0], sizes = [1, 128], strides = [1, 1]} : vector<3x128xf32> to vector<1x128xf32>
    %26 = vector.broadcast %25 : vector<1x128xf32> to vector<8x128xf32>
    %27 = arith.addf %24, %26 : vector<8x128xf32>
    %cst_7 = arith.constant 0.000000e+00 : f32
    %28 = vector.broadcast %cst_7 : f32 to vector<8x128xf32>
    %29 = arith.maximumf %27, %28 : vector<8x128xf32>
    %30 = vector.extract_strided_slice %1 {offsets = [2, 0, 0], sizes = [1, 128, 128], strides = [1, 1, 1]} : vector<3x128x128xf32> to vector<1x128x128xf32>
    %31 = vector.shape_cast %30 : vector<1x128x128xf32> to vector<128x128xf32>
    %cst_8 = arith.constant dense<0.000000e+00> : vector<8x128xf32>
    %32 = tpu.matmul %29, %31, %cst_8 {dimension_numbers = #tpu.dot_dimension_numbers<[1], [0], [0], [1], [0, 0, 1, 1], [], []>} : vector<8x128xf32>, vector<128x128xf32>, vector<8x128xf32> -> vector<8x128xf32>
    %33 = vector.extract_strided_slice %2 {offsets = [2, 0], sizes = [1, 128], strides = [1, 1]} : vector<3x128xf32> to vector<1x128xf32>
    %34 = vector.broadcast %33 : vector<1x128xf32> to vector<8x128xf32>
    %35 = arith.addf %32, %34 : vector<8x128xf32>
    %36 = vector.extract_strided_slice %35 {offsets = [0, 0], sizes = [8, 8], strides = [1, 1]} : vector<8x128xf32> to vector<8x8xf32>
    %c0_9 = arith.constant 0 : index
    %c0_10 = arith.constant 0 : index
    %37 = vector.load %arg4[%c0_9, %c0_10] : memref<8x8xf32, #tpu.memory_space<vmem>>, vector<8x8xf32>
    tpu.vector_store %arg4[%c0_9, %c0_10], %36 {strides = array<i32>} : memref<8x8xf32, #tpu.memory_space<vmem>>, vector<8x8xf32>,
    return
  }
  func.func @transform_0(%arg0: i32) -> (i32, i32) {
    %c0_i32 = arith.constant 0 : i32
    %c0_i32_0 = arith.constant 0 : i32
    return %arg0, %c0_i32 : i32, i32
  }
  func.func @transform_1(%arg0: i32) -> (i32, i32, i32) {
    %c0_i32 = arith.constant 0 : i32
    %c0_i32_0 = arith.constant 0 : i32
    %c0_i32_1 = arith.constant 0 : i32
    %c0_i32_2 = arith.constant 0 : i32
    return %c0_i32, %c0_i32_0, %c0_i32_1 : i32, i32, i32
  }
  func.func @transform_2(%arg0: i32) -> (i32, i32) {
    %c0_i32 = arith.constant 0 : i32
    %c0_i32_0 = arith.constant 0 : i32
    %c0_i32_1 = arith.constant 0 : i32
    return %c0_i32, %c0_i32_0 : i32, i32
  }
  func.func @transform_3(%arg0: i32) -> (i32, i32) {
    %c0_i32 = arith.constant 0 : i32
    %c0_i32_0 = arith.constant 0 : i32
    return %arg0, %c0_i32 : i32, i32
  }
}

</mosaic_0001>

<llo_original>
// kernel: _actor_forward_impl.1
$region0: #{_actor_forward_impl.1}
  #allocation0 [shape = 'u32[]', space=smem, size = 0x4, offset = 0x4, fixed_abs, tag = 'smem constant byte address 0x4 - core index']
  #allocation1 [shape = 'u32[144,128]{1,0:T(1,128)}', space=vmem, size = 0x12000, scoped, tag = 'internal scratch']
  %s0 = inlined_call_operand.vmem [shape: f32[8,2], index: 0, kind: input, shape index: {}]
  %s1 = inlined_call_operand.hbm [shape: f32[3,128,128], index: 1, kind: input, shape index: {}]
  %s2 = inlined_call_operand.vmem [shape: f32[3,128], index: 2, kind: input, shape index: {}]
  %s3 = inlined_call_operand.vmem [shape: f32[8,8], index: 3, kind: output, shape index: {}]
  %s4 = sld [smem:[#allocation0]]
  $region26: #{_actor_forward_impl.1} parent=0
    _
  %s6 = ssub.s32 1, %s4
  %s7 = scalar_select 0, %s6, %s4
  $region1: #{_actor_forward_impl.1} parent=0
    #allocation2 [shape = 'u8[196608]{0}', space=vmem, size = 0x30000, scoped, tag = 'input window, operand 1, single buffered']
    #allocation3 [shape = 's32[1]{0}', space=sflag, size = 0x4, scoped, tag = 'scoped memory for _actor_forward_impl.1']
    %8 = vsyncpa [#allocation3], 0
    // Predicated region
    $region2: #{_actor_forward_impl.1} parent=1 // pred_check
      _
    $region3: #{_actor_forward_impl.1} parent=1 // pred_check_branch
      %10 = sbr.rel (0) target = $region5
    $region4: #{_actor_forward_impl.1} parent=1 // pred_region
      _
    $region5: #{_actor_forward_impl.1} parent=1 // pred_fallthru
      _
    // Predicated region
    $region6: #{_actor_forward_impl.1} parent=1 // pred_check
      _
    $region7: #{_actor_forward_impl.1} parent=1 // pred_check_branch
      %12 = sbr.rel (0) target = $region9
    $region8: #{_actor_forward_impl.1} parent=1 // pred_region
      %s14 = ssub.s32 6144, 6144
      %15 = vsyncadd [#allocation3], %s14
      %s16 = sshll.u32 [#allocation2], 4
      %s17 = int_to_ptr.vmem [resolvable:$true] %s16
      %22 = dma.hbm_to_vmem [thread:$0]  %s1, 6144, %s17, [#allocation3], 128, 128, 8
    $region9: #{_actor_forward_impl.1} parent=1 // pred_fallthru
      _
    // Predicated region
    $region10: #{_actor_forward_impl.1} parent=1 // pred_check
      _
    $region11: #{_actor_forward_impl.1} parent=1 // pred_check_branch
      %24 = sbr.rel (0) target = $region13
    $region12: #{_actor_forward_impl.1} parent=1 // pred_region
      _
    $region13: #{_actor_forward_impl.1} parent=1 // pred_fallthru
      _
    // Predicated region
    $region14: #{_actor_forward_impl.1} parent=1 // pred_check
      _
    $region15: #{_actor_forward_impl.1} parent=1 // pred_check_branch
      %26 = sbr.rel (0) target = $region17
    $region16: #{_actor_forward_impl.1} parent=1 // pred_region
      %27 = dma.done [#allocation3], 6144
    $region17: #{_actor_forward_impl.1} parent=1 // pred_fallthru
      _
    %v28 = vld [vmem:[%s0] sm:$0xff]
    %v29 = vld [vmem:[#allocation2] sm:$0xff]
    %v30 = vld [vmem:[#allocation2 + $0x80] sm:$0xff]
    %v31 = vld [vmem:[#allocation2 + $0x88] sm:$0xff]
    %v32 = vld [vmem:[#allocation2 + $0x90] sm:$0xff]
    %v33 = vld [vmem:[#allocation2 + $0x98] sm:$0xff]
    %v34 = vld [vmem:[#allocation2 + $0xa0] sm:$0xff]
    %v35 = vld [vmem:[#allocation2 + $0xa8] sm:$0xff]
    %v36 = vld [vmem:[#allocation2 + $0xb0] sm:$0xff]
    %v37 = vld [vmem:[#allocation2 + $0xb8] sm:$0xff]
    %v38 = vld [vmem:[#allocation2 + $0xc0] sm:$0xff]
    %v39 = vld [vmem:[#allocation2 + $0xc8] sm:$0xff]
    %v40 = vld [vmem:[#allocation2 + $0xd0] sm:$0xff]
    %v41 = vld [vmem:[#allocation2 + $0xd8] sm:$0xff]
    %v42 = vld [vmem:[#allocation2 + $0xe0] sm:$0xff]
    %v43 = vld [vmem:[#allocation2 + $0xe8] sm:$0xff]
    %v44 = vld [vmem:[#allocation2 + $0xf0] sm:$0xff]
    %v45 = vld [vmem:[#allocation2 + $0xf8] sm:$0xff]
    %v46 = vld [vmem:[#allocation2 + $0x100] sm:$0xff]
    %v47 = vld [vmem:[#allocation2 + $0x108] sm:$0xff]
    %v48 = vld [vmem:[#allocation2 + $0x110] sm:$0xff]
    %v49 = vld [vmem:[#allocation2 + $0x118] sm:$0xff]
    %v50 = vld [vmem:[#allocation2 + $0x120] sm:$0xff]
    %v51 = vld [vmem:[#allocation2 + $0x128] sm:$0xff]
    %v52 = vld [vmem:[#allocation2 + $0x130] sm:$0xff]
    %v53 = vld [vmem:[#allocation2 + $0x138] sm:$0xff]
    %v54 = vld [vmem:[#allocation2 + $0x140] sm:$0xff]
    %v55 = vld [vmem:[#allocation2 + $0x148] sm:$0xff]
    %v56 = vld [vmem:[#allocation2 + $0x150] sm:$0xff]
    %v57 = vld [vmem:[#allocation2 + $0x158] sm:$0xff]
    %v58 = vld [vmem:[#allocation2 + $0x160] sm:$0xff]
    %v59 = vld [vmem:[#allocation2 + $0x168] sm:$0xff]
    %v60 = vld [vmem:[#allocation2 + $0x170] sm:$0xff]
    %v61 = vld [vmem:[#allocation2 + $0x178] sm:$0xff]
    %v62 = vld [vmem:[%s2] sm:$0x7]
    %v63 = vlaneseq
    %v64 = vshrl.u32 %v63, 7
    %v65 = vsub.s32 0, %v64
    %v66 = vrot.slane %v62, %v65
    %68 = vset.pattern.permute.xlu0 0
    %69 = vperm.xlu0 %68, %v28
    %v70 = vpop.permute.xlu0 %69
    %v72 = vlaneseq
    %v73 = vshrl.u32 %v72, 7
    %v74 = vsub.s32 0, %v73
    %v75 = vrot.slane %v29, %v74
    %v76 = vmul.f32 %v70, %v75
    %v77 = vadd.f32 %v66, %v76
    %78 = vset.pattern.permute.xlu0 1
    %79 = vperm.xlu0 %78, %v28
    %v80 = vpop.permute.xlu0 %79
    %v82 = vlaneseq
    %v83 = vshrl.u32 %v82, 7
    %v84 = vsub.s32 1, %v83
    %v85 = vrot.slane %v29, %v84
    %v86 = vmul.f32 %v80, %v85
    %v87 = vadd.f32 %v77, %v86
    %v88 = vmax.f32 %v87, 0.0
    %v89 = vlaneseq
    %v90 = vshrl.u32 %v89, 7
    %v91 = vsub.s32 1, %v90
    %v92 = vrot.slane %v62, %v91
    %93 = vmatprep.subr.mxu0 0.0
    %94 = vmatpush1.msra.mxu0 %v30
    %95 = vmatprep.subr.mxu0 0.0
    %96 = vmatpush1.msra.mxu0 %v31
    %97 = vmatprep.subr.mxu0 0.0
    %98 = vmatpush1.msra.mxu0 %v32
    %99 = vmatprep.subr.mxu0 0.0
    %100 = vmatpush1.msra.mxu0 %v33
    %101 = vmatprep.subr.mxu0 0.0
    %102 = vmatpush1.msra.mxu0 %v34
    %103 = vmatprep.subr.mxu0 0.0
    %104 = vmatpush1.msra.mxu0 %v35
    %105 = vmatprep.subr.mxu0 0.0
    %106 = vmatpush1.msra.mxu0 %v36
    %107 = vmatprep.subr.mxu0 0.0
    %108 = vmatpush1.msra.mxu0 %v37
    %109 = vmatprep.subr.mxu0 0.0
    %110 = vmatpush1.msra.mxu0 %v38
    %111 = vmatprep.subr.mxu0 0.0
    %112 = vmatpush1.msra.mxu0 %v39
    %113 = vmatprep.subr.mxu0 0.0
    %114 = vmatpush1.msra.mxu0 %v40
    %115 = vmatprep.subr.mxu0 0.0
    %116 = vmatpush1.msra.mxu0 %v41
    %117 = vmatprep.subr.mxu0 0.0
    %118 = vmatpush1.msra.mxu0 %v42
    %119 = vmatprep.subr.mxu0 0.0
    %120 = vmatpush1.msra.mxu0 %v43
    %121 = vmatprep.subr.mxu0 0.0
    %122 = vmatpush1.msra.mxu0 %v44
    %123 = vmatprep.subr.mxu0 0.0
    %124 = vmatpush1.msra.mxu0 %v45
    %125 = vmatprep.subr.mxu0 0.0
    %126 = vmatpush1.msra.mxu0 0.0
    %127 = vmatprep.subr.mxu0 0.0
    %128 = vmatpush1.msra.mxu0 0.0
    %129 = vmatprep.subr.mxu0 0.0
    %130 = vmatpush1.msra.mxu0 0.0
    %131 = vmatprep.subr.mxu0 0.0
    %132 = vmatpush1.msra.mxu0 0.0
    %133 = vmatprep.subr.mxu0 0.0
    %134 = vmatpush1.msra.mxu0 0.0
    %135 = vmatprep.subr.mxu0 0.0
    %136 = vmatpush1.msra.mxu0 0.0
    %137 = vmatprep.subr.mxu0 0.0
    %138 = vmatpush1.msra.mxu0 0.0
    %139 = vmatprep.subr.mxu0 0.0
    %140 = vmatpush1.msra.mxu0 0.0
    %141 = vmatprep.subr.mxu0 0.0
    %142 = vmatpush1.msra.mxu0 0.0
    %143 = vmatprep.subr.mxu0 0.0
    %144 = vmatpush1.msra.mxu0 0.0
    %145 = vmatprep.subr.mxu0 0.0
    %146 = vmatpush1.msra.mxu0 0.0
    %147 = vmatprep.subr.mxu0 0.0
    %148 = vmatpush1.msra.mxu0 0.0
    %149 = vmatprep.subr.mxu0 0.0
    %150 = vmatpush1.msra.mxu0 0.0
    %151 = vmatprep.subr.mxu0 0.0
    %152 = vmatpush1.msra.mxu0 0.0
    %153 = vmatprep.subr.mxu0 0.0
    %154 = vmatpush1.msra.mxu0 0.0
    %155 = vmatprep.subr.mxu0 0.0
    %156 = vmatpush1.msra.mxu0 0.0
    %157 = vmatprep.mubr.f32.mxu0 0.0
    %158 = vmatmul.mubr.f32.gmra.mrb[0].mxu0 %v88
    %v159 = vpop.f32.mrb[0].mxu0
    %v160 = vadd.f32 %v92, %v159
    %v161 = vpop.f32.mrb[0].mxu0
    %162 = vdwg.mxu0
    %v163 = vmax.f32 %v160, 0.0
    %v164 = vlaneseq
    %v165 = vshrl.u32 %v164, 7
    %v166 = vsub.s32 2, %v165
    %v167 = vrot.slane %v62, %v166
    %168 = vmatprep.subr.mxu0 0.0
    %169 = vmatpush1.msra.mxu0 %v46
    %170 = vmatprep.subr.mxu0 0.0
    %171 = vmatpush1.msra.mxu0 %v47
    %172 = vmatprep.subr.mxu0 0.0
    %173 = vmatpush1.msra.mxu0 %v48
    %174 = vmatprep.subr.mxu0 0.0
    %175 = vmatpush1.msra.mxu0 %v49
    %176 = vmatprep.subr.mxu0 0.0
    %177 = vmatpush1.msra.mxu0 %v50
    %178 = vmatprep.subr.mxu0 0.0
    %179 = vmatpush1.msra.mxu0 %v51
    %180 = vmatprep.subr.mxu0 0.0
    %181 = vmatpush1.msra.mxu0 %v52
    %182 = vmatprep.subr.mxu0 0.0
    %183 = vmatpush1.msra.mxu0 %v53
    %184 = vmatprep.subr.mxu0 0.0
    %185 = vmatpush1.msra.mxu0 %v54
    %186 = vmatprep.subr.mxu0 0.0
    %187 = vmatpush1.msra.mxu0 %v55
    %188 = vmatprep.subr.mxu0 0.0
    %189 = vmatpush1.msra.mxu0 %v56
    %190 = vmatprep.subr.mxu0 0.0
    %191 = vmatpush1.msra.mxu0 %v57
    %192 = vmatprep.subr.mxu0 0.0
    %193 = vmatpush1.msra.mxu0 %v58
    %194 = vmatprep.subr.mxu0 0.0
    %195 = vmatpush1.msra.mxu0 %v59
    %196 = vmatprep.subr.mxu0 0.0
    %197 = vmatpush1.msra.mxu0 %v60
    %198 = vmatprep.subr.mxu0 0.0
    %199 = vmatpush1.msra.mxu0 %v61
    %200 = vmatprep.subr.mxu0 0.0
    %201 = vmatpush1.msra.mxu0 0.0
    %202 = vmatprep.subr.mxu0 0.0
    %203 = vmatpush1.msra.mxu0 0.0
    %204 = vmatprep.subr.mxu0 0.0
    %205 = vmatpush1.msra.mxu0 0.0
    %206 = vmatprep.subr.mxu0 0.0
    %207 = vmatpush1.msra.mxu0 0.0
    %208 = vmatprep.subr.mxu0 0.0
    %209 = vmatpush1.msra.mxu0 0.0
    %210 = vmatprep.subr.mxu0 0.0
    %211 = vmatpush1.msra.mxu0 0.0
    %212 = vmatprep.subr.mxu0 0.0
    %213 = vmatpush1.msra.mxu0 0.0
    %214 = vmatprep.subr.mxu0 0.0
    %215 = vmatpush1.msra.mxu0 0.0
    %216 = vmatprep.subr.mxu0 0.0
    %217 = vmatpush1.msra.mxu0 0.0
    %218 = vmatprep.subr.mxu0 0.0
    %219 = vmatpush1.msra.mxu0 0.0
    %220 = vmatprep.subr.mxu0 0.0
    %221 = vmatpush1.msra.mxu0 0.0
    %222 = vmatprep.subr.mxu0 0.0
    %223 = vmatpush1.msra.mxu0 0.0
    %224 = vmatprep.subr.mxu0 0.0
    %225 = vmatpush1.msra.mxu0 0.0
    %226 = vmatprep.subr.mxu0 0.0
    %227 = vmatpush1.msra.mxu0 0.0
    %228 = vmatprep.subr.mxu0 0.0
    %229 = vmatpush1.msra.mxu0 0.0
    %230 = vmatprep.subr.mxu0 0.0
    %231 = vmatpush1.msra.mxu0 0.0
    %232 = vmatprep.mubr.f32.mxu0 0.0
    %233 = vmatmul.mubr.f32.gmra.mrb[0].mxu0 %v163
    %v234 = vpop.f32.mrb[0].mxu0
    %v235 = vadd.f32 %v167, %v234
    %v236 = vpop.f32.mrb[0].mxu0
    %237 = vdwg.mxu0
    %vm238 = vcmask 64512
    %239 = vst.msk [vmem:[%s3] sm:$0xff] %vm238, %v235
    // Predicated region
    $region18: #{_actor_forward_impl.1} parent=1 // pred_check
      _
    $region19: #{_actor_forward_impl.1} parent=1 // pred_check_branch
      %241 = sbr.rel (0) target = $region21
    $region20: #{_actor_forward_impl.1} parent=1 // pred_region
      _
    $region21: #{_actor_forward_impl.1} parent=1 // pred_fallthru
      _
    // Predicated region
    $region22: #{_actor_forward_impl.1} parent=1 // pred_check
      _
    $region23: #{_actor_forward_impl.1} parent=1 // pred_check_branch
      %243 = sbr.rel (0) target = $region25
    $region24: #{_actor_forward_impl.1} parent=1 // pred_region
      _
    $region25: #{_actor_forward_impl.1} parent=1 // pred_fallthru
      _
    %244 = vsyncpa [#allocation3], 1

</llo_original>
